<compile_context>
chip_gen: v7x
topology: tpu7x:2x2x1
jax: 0.10.0
libtpu: 0.0.40
codegen_flags: <defaults>
</compile_context>

<pallas_src>
import jax
import jax.numpy as jnp
from jax.experimental import pallas as pl
from jax.experimental.pallas import tpu as pltpu

EPS = 1e-5


def _round_up(x, m):
    return (x + m - 1) // m * m


def _device_budget():
    """Return (target lane width per tile, vmem_limit_bytes) sized per TPU generation."""
    try:
        cap = int(getattr(pltpu.get_tpu_info(), "vmem_capacity_bytes"))
    except Exception:
        cap = 64 * 1024 * 1024          # assume the v7x worst case
    if cap < 16 * 1024 * 1024:          # implausible report -> fall back
        cap = 64 * 1024 * 1024
    # v5e/v6e (128 MiB VMEM): big tiles, ~96 MiB scoped.  v7x (64 MiB): ~512-lane tiles
    # and ~48 MiB scoped, leaving headroom for compiler scratch + double buffering.
    target_lanes = 2048 if cap >= 100 * 1024 * 1024 else 512
    return target_lanes, int(cap * 3 // 4)


# --------------------------------------------------------------------------------------
# Kernels
# --------------------------------------------------------------------------------------
def _make_conv_stats_kernel(K, P, inv_count, pre_affine):
    """Conv (K per-tap MXU matmuls accumulated in f32) + per-tile BN partial stats.

    If `pre_affine`, the input tile is first mapped through the previous BN's folded
    scale/shift + ReLU and re-masked (restoring the zero pads), fusing that BN apply
    into the pass that already streams the tile for the next conv.
    Conv bias intentionally omitted: exact no-op before training-mode BatchNorm.
    """

    def kernel(*refs):
        if pre_affine:
            x_ref, m_ref, w_ref, sc_ref, sh_ref, y_ref, sum_ref, m2_ref = refs
        else:
            x_ref, m_ref, w_ref, y_ref, sum_ref, m2_ref = refs

        mask = m_ref[...]                                    # (1, TL), 1.0 on valid lanes
        x = x_ref[...].astype(jnp.float32)                   # (Cin, TL)
        if pre_affine:
            x = jnp.maximum(x * sc_ref[...] + sh_ref[...], 0.0) * mask

        tl = x.shape[1]
        # Per-tap accumulated matmuls: acc += W_k @ roll(x, P - k).  Per-sample zero
        # pads inside each 128-aligned slot guarantee valid output lanes never observe
        # the circular wrap.  (On v7x consecutive dot accumulations can stay on the MRB.)
        # TODO(synk): for tiny Cin a single (Cout, K*Cin)@(K*Cin, TL) im2col matmul
        # would keep the MXU better fed; per-tap is the VMEM-lean default.
        acc = None
        for k in range(K):
            shift = (P - k) % tl
            xs = pltpu.roll(x, shift, 1) if shift else x
            wk = w_ref[k].astype(jnp.float32)                # (Cout, Cin)
            part = jnp.dot(wk, xs, preferred_element_type=jnp.float32)
            acc = part if acc is None else acc + part
        y_ref[...] = acc                                     # lane-dense store

        # BN partial stats while the tile is still in vregs: masked sum and
        # tile-centered M2 (combined across tiles with Chan's formula in the wrapper).
        ym = acc * mask
        s = jnp.sum(ym, axis=1, keepdims=True)               # (Cout, 1)
        d = (acc - s * inv_count) * mask
        sum_ref[...] = s[None]
        m2_ref[...] = jnp.sum(d * d, axis=1, keepdims=True)[None]

    return kernel


def _make_stats_kernel(inv_count):
    """BN partial stats of h2 = relu(y*scale + shift) (bn2 input), without storing h2."""

    def kernel(y_ref, m_ref, sc_ref, sh_ref, sum_ref, m2_ref):
        mask = m_ref[...]
        h = jnp.maximum(y_ref[...] * sc_ref[...] + sh_ref[...], 0.0)
        s = jnp.sum(h * mask, axis=1, keepdims=True)
        d = (h - s * inv_count) * mask
        sum_ref[...] = s[None]
        m2_ref[...] = jnp.sum(d * d, axis=1, keepdims=True)[None]

    return kernel


def _apply_kernel(y_ref, x_ref, sc2_ref, sh2_ref, sc3_ref, sh3_ref, o_ref):
    """Fused epilogue: h2 = relu(bn_a(y2)); out = relu(bn_b(h2) + x).  One lane-dense pass."""
    h = jnp.maximum(y_ref[...] * sc2_ref[...] + sh2_ref[...], 0.0)
    o_ref[...] = jnp.maximum(h * sc3_ref[...] + sh3_ref[...] + x_ref[...], 0.0)


# --------------------------------------------------------------------------------------
# Wrapper
# --------------------------------------------------------------------------------------
def _fold_bn(psum, pm2, gamma, beta, count_tile, count_total):
    """Chan-combine per-tile (sum, centered M2) partials; fold BN into scale/shift."""
    s = psum[:, :, 0]                                        # (G, C)
    m2 = pm2[:, :, 0]                                        # (G, C)
    tile_mean = s / count_tile
    mean = jnp.sum(s, axis=0) / count_total                  # (C,)
    m2_tot = jnp.sum(m2, axis=0) + count_tile * jnp.sum((tile_mean - mean) ** 2, axis=0)
    var = m2_tot / count_total                               # biased var (training mode)
    scale = gamma / jnp.sqrt(var + EPS)
    shift = beta - mean * scale
    return scale[:, None], shift[:, None]                    # (C, 1) each


def conv1d_basic_block(x_ncl, params, kernel_size, padding, samples_per_tile=None):
    """Forward pass of Conv1DBasicBlock (training-mode BN).  x_ncl: (N, C, L) float32."""
    N, C, L = x_ncl.shape
    K, P = kernel_size, padding
    if 2 * P != K - 1:
        raise ValueError("residual add requires 'same' conv: 2*padding == kernel_size-1")

    S = _round_up(L + 2 * P, 128)            # per-sample 128-aligned lane slot
    target_lanes, vmem_limit = _device_budget()
    if samples_per_tile is None:
        spt = 1
        for d in range(1, N + 1):
            if N % d == 0 and d * S <= max(S, target_lanes):
                spt = d
    else:
        spt = int(samples_per_tile)
        if N % spt != 0:
            raise ValueError("samples_per_tile must divide the batch size")
    G = N // spt                             # grid size; fully parallel across tiles
    TL = spt * S                             # lane-dense tile width (multiple of 128)
    cnt_tile = float(spt * L)                # valid elements per tile per channel
    cnt_total = float(N * L)

    f32 = jnp.float32
    # Layout plumbing (wrapper-side, tiny vs. the streamed tensors): NCL -> (C, N*S)
    # with zero pads that double as the conv's zero padding.
    xpad = jnp.pad(x_ncl.astype(f32), ((0, 0), (0, 0), (P, S - L - P)))    # (N, C, S)
    xp = jnp.transpose(xpad, (1, 0, 2)).reshape(C, N * S)
    lane = jnp.arange(S)
    mask = jnp.tile(((lane >= P) & (lane < P + L)).astype(f32), N).reshape(1, N * S)

    # PyTorch conv weight (O, I, K) -> per-tap (K, O, I).  b1/b2 dropped (see header).
    w1 = jnp.transpose(params['w1'], (2, 0, 1)).astype(f32)
    w2 = jnp.transpose(params['w2'], (2, 0, 1)).astype(f32)
    g1, be1 = params['g1'].astype(f32), params['be1'].astype(f32)
    g2, be2 = params['g2'].astype(f32), params['be2'].astype(f32)
    g3, be3 = params['g3'].astype(f32), params['be3'].astype(f32)

    def lane_spec(rows):
        return pl.BlockSpec((rows, TL), lambda g: (0, g))

    def const_spec(shape):
        return pl.BlockSpec(shape, lambda g, nd=len(shape): (0,) * nd)

    stat_spec = pl.BlockSpec((1, C, 1), lambda g: (g, 0, 0))
    cp = pltpu.CompilerParams(dimension_semantics=("parallel",),
                              vmem_limit_bytes=vmem_limit)
    act_shape = jax.ShapeDtypeStruct((C, N * S), f32)
    stat_shape = jax.ShapeDtypeStruct((G, C, 1), f32)

    def conv_call(pre_affine, extra_in_specs):
        return pl.pallas_call(
            _make_conv_stats_kernel(K, P, 1.0 / cnt_tile, pre_affine),
            out_shape=(act_shape, stat_shape, stat_shape),
            grid_spec=pl.GridSpec(
                grid=(G,),
                in_specs=[lane_spec(C), lane_spec(1), const_spec((K, C, C))] + extra_in_specs,
                out_specs=(lane_spec(C), stat_spec, stat_spec)),
            compiler_params=cp)

    # stage 1: conv1 + bn1 partial stats
    y1, s1, q1 = conv_call(False, [])(xp, mask, w1)
    sc1, sh1 = _fold_bn(s1, q1, g1, be1, cnt_tile, cnt_total)

    # stage 2: (bn1 apply + ReLU) fused into conv2, + bn-of-conv2 partial stats
    y2, s2, q2 = conv_call(True, [const_spec((C, 1))] * 2)(y1, mask, w2, sc1, sh1)
    sc2, sh2 = _fold_bn(s2, q2, g2, be2, cnt_tile, cnt_total)

    # stage 3: bn2 partial stats of h2 = relu(bn_a(y2))  (h2 recomputed, never stored)
    s3, q3 = pl.pallas_call(
        _make_stats_kernel(1.0 / cnt_tile),
        out_shape=(stat_shape, stat_shape),
        grid_spec=pl.GridSpec(
            grid=(G,),
            in_specs=[lane_spec(C), lane_spec(1), const_spec((C, 1)), const_spec((C, 1))],
            out_specs=(stat_spec, stat_spec)),
        compiler_params=cp)(y2, mask, sc2, sh2)
    sc3, sh3 = _fold_bn(s3, q3, g3, be3, cnt_tile, cnt_total)

    # stage 4: fused epilogue (bn_a + ReLU + bn_b + residual + ReLU), lane-dense stores
    out2d = pl.pallas_call(
        _apply_kernel,
        out_shape=act_shape,
        grid_spec=pl.GridSpec(
            grid=(G,),
            in_specs=[lane_spec(C), lane_spec(C)] + [const_spec((C, 1))] * 4,
            out_specs=lane_spec(C)),
        compiler_params=cp)(y2, xp, sc2, sh2, sc3, sh3)

    # back to NCL, dropping the per-sample pad lanes
    return jnp.transpose(out2d.reshape(C, N, S)[:, :, P:P + L], (1, 0, 2))


# --------------------------------------------------------------------------------------
# Pure-JAX reference (same math as the PyTorch module in training mode)
# --------------------------------------------------------------------------------------
def reference_forward(x_ncl, params, padding):
    P = padding
    hp = jax.lax.Precision.HIGHEST

    def conv(x, w, b):
        y = jax.lax.conv_general_dilated(
            x, w, window_strides=(1,), padding=[(P, P)],
            dimension_numbers=('NCH', 'OIH', 'NCH'), precision=hp)
        return y + b[None, :, None]

    def bn(y, g, be):
        mean = jnp.mean(y, axis=(0, 2), keepdims=True)
        var = jnp.mean((y - mean) ** 2, axis=(0, 2), keepdims=True)
        return (y - mean) / jnp.sqrt(var + EPS) * g[None, :, None] + be[None, :, None]

    h = jax.nn.relu(bn(conv(x_ncl, params['w1'], params['b1']), params['g1'], params['be1']))
    h = jax.nn.relu(bn(conv(h, params['w2'], params['b2']), params['g2'], params['be2']))
    h = bn(h, params['g3'], params['be3'])
    return jax.nn.relu(h + x_ncl)


def _make_params(key, C, K):
    ks = jax.random.split(key, 10)
    return {
        'w1':  jax.random.normal(ks[0], (C, C, K), jnp.float32) * 0.2,
        'b1':  jax.random.normal(ks[1], (C,), jnp.float32) * 0.1,
        'g1':  1.0 + 0.1 * jax.random.normal(ks[2], (C,), jnp.float32),
        'be1': 0.1 * jax.random.normal(ks[3], (C,), jnp.float32),
        'w2':  jax.random.normal(ks[4], (C, C, K), jnp.float32) * 0.2,
        'b2':  jax.random.normal(ks[5], (C,), jnp.float32) * 0.1,
        'g2':  1.0 + 0.1 * jax.random.normal(ks[6], (C,), jnp.float32),
        'be2': 0.1 * jax.random.normal(ks[7], (C,), jnp.float32),
        'g3':  1.0 + 0.1 * jax.random.normal(ks[8], (C,), jnp.float32),
        'be3': 0.1 * jax.random.normal(ks[9], (C,), jnp.float32),
    }


if __name__ == "__main__":
    root = jax.random.PRNGKey(0)
    k_small, k_big = jax.random.split(root)

    # Test 1: nominal small shape (N=2, C=4, L=16), auto tile selection.
    N, C, L, K, P = 2, 4, 16, 3, 1
    kp, kx = jax.random.split(k_small)
    params = _make_params(kp, C, K)
    x = jax.random.normal(kx, (N, C, L), jnp.float32)
    out = jax.block_until_ready(conv1d_basic_block(x, params, K, P))
    ref = jax.block_until_ready(reference_forward(x, params, P))
    assert out.shape == (N, C, L)
    err = float(jnp.max(jnp.abs(out - ref)))
    assert jnp.allclose(out, ref, atol=1e-4, rtol=1e-4), f"small-shape max abs diff = {err}"

    # Test 2: multi-tile grid (1 sample per tile -> 4 grid steps), C=8 sublanes,
    # L not a multiple of 128 — exercises tiling, lane masking and the cross-tile
    # (Chan) BatchNorm-statistics combine.
    N2, C2, L2 = 4, 8, 300
    kp2, kx2 = jax.random.split(k_big)
    params2 = _make_params(kp2, C2, K)
    x2 = jax.random.normal(kx2, (N2, C2, L2), jnp.float32)
    out2 = jax.block_until_ready(
        conv1d_basic_block(x2, params2, K, P, samples_per_tile=1))
    ref2 = jax.block_until_ready(reference_forward(x2, params2, P))
    assert out2.shape == (N2, C2, L2)
    err2 = float(jnp.max(jnp.abs(out2 - ref2)))
    assert jnp.allclose(out2, ref2, atol=2e-4, rtol=2e-4), f"tiled-shape max abs diff = {err2}"

    print("KERNEL_OK")
</pallas_src>

<mosaic_0001>
module attributes {stable_mosaic.version = 11 : i64} {
  func.func @kernel(%arg0: i32, %arg1: memref<4x256xf32, #tpu.memory_space<vmem>>, %arg2: memref<1x256xf32, #tpu.memory_space<vmem>>, %arg3: memref<3x4x4xf32, #tpu.memory_space<vmem>>, %arg4: memref<4x256xf32, #tpu.memory_space<vmem>>, %arg5: memref<1x4x1xf32, #tpu.memory_space<vmem>>, %arg6: memref<1x4x1xf32, #tpu.memory_space<vmem>>) attributes {dimension_semantics = [#tpu.dimension_semantics<parallel>], iteration_bounds = array<i64: 1>, scalar_prefetch = 0 : i64, scratch_operands = 0 : i64, tpu.core_type = #tpu.core_type<tc>, window_params = [{transform_indices = @transform_0, window_bounds = array<i64: 4, 256>}, {transform_indices = @transform_1, window_bounds = array<i64: 1, 256>}, {pipeline_mode = #tpu.pipeline_mode<synchronous>, transform_indices = @transform_2, window_bounds = array<i64: 3, 4, 4>}, {transform_indices = @transform_3, window_bounds = array<i64: 4, 256>}, {transform_indices = @transform_4, window_bounds = array<i64: 1, 4, 1>}, {transform_indices = @transform_5, window_bounds = array<i64: 1, 4, 1>}]} {
    %c0 = arith.constant 0 : index
    %c0_0 = arith.constant 0 : index
    %0 = vector.load %arg2[%c0, %c0_0] : memref<1x256xf32, #tpu.memory_space<vmem>>, vector<1x256xf32>
    %c0_1 = arith.constant 0 : index
    %c0_2 = arith.constant 0 : index
    %1 = vector.load %arg1[%c0_1, %c0_2] : memref<4x256xf32, #tpu.memory_space<vmem>>, vector<4x256xf32>
    %c1_i32 = arith.constant 1 : i32
    %2 = tpu.dynamic_rotate %1 by %c1_i32 dim 1 : vector<4x256xf32>, i32 -> vector<4x256xf32>
    %c0_3 = arith.constant 0 : index
    %c0_4 = arith.constant 0 : index
    %c0_5 = arith.constant 0 : index
    %3 = vector.load %arg3[%c0_3, %c0_4, %c0_5] : memref<3x4x4xf32, #tpu.memory_space<vmem>>, vector<1x4x4xf32>
    %4 = vector.shape_cast %3 : vector<1x4x4xf32> to vector<4x4xf32>
    %cst = arith.constant dense<0.000000e+00> : vector<4x256xf32>
    %5 = tpu.matmul %4, %2, %cst {dimension_numbers = #tpu.dot_dimension_numbers<[1], [0], [0], [1], [0, 0, 1, 1], [], []>} : vector<4x4xf32>, vector<4x256xf32>, vector<4x256xf32> -> vector<4x256xf32>
    %c1 = arith.constant 1 : index
    %c0_6 = arith.constant 0 : index
    %c0_7 = arith.constant 0 : index
    %6 = vector.load %arg3[%c1, %c0_6, %c0_7] : memref<3x4x4xf32, #tpu.memory_space<vmem>>, vector<1x4x4xf32>
    %7 = vector.shape_cast %6 : vector<1x4x4xf32> to vector<4x4xf32>
    %cst_8 = arith.constant dense<0.000000e+00> : vector<4x256xf32>
    %8 = tpu.matmul %7, %1, %cst_8 {dimension_numbers = #tpu.dot_dimension_numbers<[1], [0], [0], [1], [0, 0, 1, 1], [], []>} : vector<4x4xf32>, vector<4x256xf32>, vector<4x256xf32> -> vector<4x256xf32>
    %9 = arith.addf %5, %8 : vector<4x256xf32>
    %c255_i32 = arith.constant 255 : i32
    %10 = tpu.dynamic_rotate %1 by %c255_i32 dim 1 : vector<4x256xf32>, i32 -> vector<4x256xf32>
    %c2 = arith.constant 2 : index
    %c0_9 = arith.constant 0 : index
    %c0_10 = arith.constant 0 : index
    %11 = vector.load %arg3[%c2, %c0_9, %c0_10] : memref<3x4x4xf32, #tpu.memory_space<vmem>>, vector<1x4x4xf32>
    %12 = vector.shape_cast %11 : vector<1x4x4xf32> to vector<4x4xf32>
    %cst_11 = arith.constant dense<0.000000e+00> : vector<4x256xf32>
    %13 = tpu.matmul %12, %10, %cst_11 {dimension_numbers = #tpu.dot_dimension_numbers<[1], [0], [0], [1], [0, 0, 1, 1], [], []>} : vector<4x4xf32>, vector<4x256xf32>, vector<4x256xf32> -> vector<4x256xf32>
    %14 = arith.addf %9, %13 : vector<4x256xf32>
    %c0_12 = arith.constant 0 : index
    %c0_13 = arith.constant 0 : index
    %15 = vector.load %arg4[%c0_12, %c0_13] : memref<4x256xf32, #tpu.memory_space<vmem>>, vector<4x256xf32>
    tpu.vector_store %arg4[%c0_12, %c0_13], %14 {strides = array<i32>} : memref<4x256xf32, #tpu.memory_space<vmem>>, vector<4x256xf32>,
    %16 = vector.broadcast %0 : vector<1x256xf32> to vector<4x256xf32>
    %17 = arith.mulf %14, %16 : vector<4x256xf32>
    %cst_14 = arith.constant dense<0.000000e+00> : vector<4xf32>
    %18 = vector.multi_reduction <add>, %17, %cst_14 [1] : vector<4x256xf32> to vector<4xf32>
    %19 = vector.shape_cast %18 : vector<4xf32> to vector<4x1xf32>
    %cst_15 = arith.constant 3.125000e-02 : f32
    %20 = vector.broadcast %cst_15 : f32 to vector<4x1xf32>
    %21 = arith.mulf %19, %20 : vector<4x1xf32>
    %22 = vector.broadcast %21 : vector<4x1xf32> to vector<4x256xf32>
    %23 = arith.subf %14, %22 : vector<4x256xf32>
    %24 = vector.broadcast %0 : vector<1x256xf32> to vector<4x256xf32>
    %25 = arith.mulf %23, %24 : vector<4x256xf32>
    %26 = vector.shape_cast %19 : vector<4x1xf32> to vector<1x4x1xf32>
    %c0_16 = arith.constant 0 : index
    %c0_17 = arith.constant 0 : index
    %c0_18 = arith.constant 0 : index
    %27 = vector.load %arg5[%c0_16, %c0_17, %c0_18] : memref<1x4x1xf32, #tpu.memory_space<vmem>>, vector<1x4x1xf32>
    tpu.vector_store %arg5[%c0_16, %c0_17, %c0_18], %26 {strides = array<i32>} : memref<1x4x1xf32, #tpu.memory_space<vmem>>, vector<1x4x1xf32>,
    %28 = arith.mulf %25, %25 : vector<4x256xf32>
    %cst_19 = arith.constant dense<0.000000e+00> : vector<4xf32>
    %29 = vector.multi_reduction <add>, %28, %cst_19 [1] : vector<4x256xf32> to vector<4xf32>
    %30 = vector.shape_cast %29 : vector<4xf32> to vector<4x1xf32>
    %31 = vector.shape_cast %30 : vector<4x1xf32> to vector<1x4x1xf32>
    %c0_20 = arith.constant 0 : index
    %c0_21 = arith.constant 0 : index
    %c0_22 = arith.constant 0 : index
    %32 = vector.load %arg6[%c0_20, %c0_21, %c0_22] : memref<1x4x1xf32, #tpu.memory_space<vmem>>, vector<1x4x1xf32>
    tpu.vector_store %arg6[%c0_20, %c0_21, %c0_22], %31 {strides = array<i32>} : memref<1x4x1xf32, #tpu.memory_space<vmem>>, vector<1x4x1xf32>,
    return
  }
  func.func @transform_0(%arg0: i32) -> (i32, i32) {
    %c0_i32 = arith.constant 0 : i32
    %c0_i32_0 = arith.constant 0 : i32
    return %c0_i32, %arg0 : i32, i32
  }
  func.func @transform_1(%arg0: i32) -> (i32, i32) {
    %c0_i32 = arith.constant 0 : i32
    %c0_i32_0 = arith.constant 0 : i32
    return %c0_i32, %arg0 : i32, i32
  }
  func.func @transform_2(%arg0: i32) -> (i32, i32, i32) {
    %c0_i32 = arith.constant 0 : i32
    %c0_i32_0 = arith.constant 0 : i32
    %c0_i32_1 = arith.constant 0 : i32
    %c0_i32_2 = arith.constant 0 : i32
    return %c0_i32, %c0_i32_0, %c0_i32_1 : i32, i32, i32
  }
  func.func @transform_3(%arg0: i32) -> (i32, i32) {
    %c0_i32 = arith.constant 0 : i32
    %c0_i32_0 = arith.constant 0 : i32
    return %c0_i32, %arg0 : i32, i32
  }
  func.func @transform_4(%arg0: i32) -> (i32, i32, i32) {
    %c0_i32 = arith.constant 0 : i32
    %c0_i32_0 = arith.constant 0 : i32
    %c0_i32_1 = arith.constant 0 : i32
    return %arg0, %c0_i32, %c0_i32_0 : i32, i32, i32
  }
  func.func @transform_5(%arg0: i32) -> (i32, i32, i32) {
    %c0_i32 = arith.constant 0 : i32
    %c0_i32_0 = arith.constant 0 : i32
    %c0_i32_1 = arith.constant 0 : i32
    return %arg0, %c0_i32, %c0_i32_0 : i32, i32, i32
  }
}

</mosaic_0001>

<llo_original>
// kernel: tpu_custom_call.1
$region0: #{tpu_custom_call.1}
  #allocation0 [shape = 'u32[]', space=smem, size = 0x4, offset = 0x4, fixed_abs, tag = 'smem constant byte address 0x4 - core index']
  #allocation1 [shape = 'u32[144,128]{1,0:T(1,128)}', space=vmem, size = 0x12000, scoped, tag = 'internal scratch']
  %s0 = inlined_call_operand.hbm [shape: f32[4,256], index: 0, kind: input, shape index: {}]
  %s1 = inlined_call_operand.vmem [shape: f32[1,256], index: 1, kind: input, shape index: {}]
  %s2 = inlined_call_operand.hbm [shape: f32[3,4,4], index: 2, kind: input, shape index: {}]
  %s3 = inlined_call_operand.hbm [shape: f32[4,256], index: 3, kind: output, shape index: {0}]
  %s4 = inlined_call_operand.vmem [shape: f32[1,4,1], index: 4, kind: output, shape index: {1}]
  %s5 = inlined_call_operand.vmem [shape: f32[1,4,1], index: 5, kind: output, shape index: {2}]
  %6 = xla_tuple %s3, %s4, %s5
  %s7 = sld [smem:[#allocation0]]
  $region46: #{tpu_custom_call.1} parent=0
    _
  %s9 = ssub.s32 1, %s7
  %s10 = scalar_select 0, %s9, %s7
  $region1: #{tpu_custom_call.1} parent=0
    #allocation2 [shape = 'u8[4096]{0}', space=vmem, size = 0x1000, scoped, tag = 'input window, operand 0, single buffered']
    #allocation3 [shape = 's32[1]{0}', space=sflag, size = 0x4, scoped, tag = 'scoped memory for tpu_custom_call.1']
    #allocation4 [shape = 's32[1]{0}', space=sflag, size = 0x4, scoped, tag = 'scoped memory for tpu_custom_call.1']
    #allocation5 [shape = 'u8[6144]{0}', space=vmem, size = 0x1800, scoped, tag = 'input window, operand 2, single buffered']
    #allocation6 [shape = 's32[1]{0}', space=sflag, size = 0x4, scoped, tag = 'scoped memory for tpu_custom_call.1']
    #allocation7 [shape = 'u8[4096]{0}', space=vmem, size = 0x1000, scoped, tag = 'output window, operand 0, single buffered']
    %11 = vsyncpa [#allocation3], 0
    %12 = vsyncpa [#allocation6], 0
    %13 = vsyncpa [#allocation4], 0
    // Predicated region
    $region2: #{tpu_custom_call.1} parent=1 // pred_check
      _
    $region3: #{tpu_custom_call.1} parent=1 // pred_check_branch
      %15 = sbr.rel (0) target = $region5
    $region4: #{tpu_custom_call.1} parent=1 // pred_region
      %s17 = ssub.s32 128, 128
      %18 = vsyncadd [#allocation3], %s17
      %s20 = sshll.u32 [#allocation2], 4
      %s21 = int_to_ptr.vmem [resolvable:$true] %s20
      %23 = dma.hbm_to_vmem [thread:$0]  %s0, 128, %s21, [#allocation3]
    $region5: #{tpu_custom_call.1} parent=1 // pred_fallthru
      _
    // Predicated region
    $region6: #{tpu_custom_call.1} parent=1 // pred_check
      _
    $region7: #{tpu_custom_call.1} parent=1 // pred_check_branch
      %25 = sbr.rel (0) target = $region9
    $region8: #{tpu_custom_call.1} parent=1 // pred_region
      _
    $region9: #{tpu_custom_call.1} parent=1 // pred_fallthru
      _
    // Predicated region
    $region10: #{tpu_custom_call.1} parent=1 // pred_check
      _
    $region11: #{tpu_custom_call.1} parent=1 // pred_check_branch
      %27 = sbr.rel (0) target = $region13
    $region12: #{tpu_custom_call.1} parent=1 // pred_region
      %s29 = ssub.s32 192, 192
      %30 = vsyncadd [#allocation6], %s29
      %s31 = sshll.u32 [#allocation5], 4
      %s32 = int_to_ptr.vmem [resolvable:$true] %s31
      %37 = dma.hbm_to_vmem [thread:$0]  %s2, 192, %s32, [#allocation6], 64, 64, 4
    $region13: #{tpu_custom_call.1} parent=1 // pred_fallthru
      _
    // Predicated region
    $region14: #{tpu_custom_call.1} parent=1 // pred_check
      _
    $region15: #{tpu_custom_call.1} parent=1 // pred_check_branch
      %39 = sbr.rel (0) target = $region17
    $region16: #{tpu_custom_call.1} parent=1 // pred_region
      %40 = dma.done [#allocation3], 128
    $region17: #{tpu_custom_call.1} parent=1 // pred_fallthru
      _
    // Predicated region
    $region18: #{tpu_custom_call.1} parent=1 // pred_check
      _
    $region19: #{tpu_custom_call.1} parent=1 // pred_check_branch
      %42 = sbr.rel (0) target = $region21
    $region20: #{tpu_custom_call.1} parent=1 // pred_region
      %43 = dma.done [#allocation6], 192
    $region21: #{tpu_custom_call.1} parent=1 // pred_fallthru
      _
    %v44 = vld [vmem:[%s1] sm:$0x3]
    %v45 = vld [vmem:[#allocation2] sm:$0xff]
    %v47 = vcombine.high %v45, %v45
    %49 = vrot.lane.b32.xlu0 %v45, 1
    %v50 = vpop.permute.xlu0 %49
    %51 = vrot.lane.b32.xlu0 %v47, 1
    %v52 = vpop.permute.xlu0 %51
    %v53 = vlaneseq
    %v54 = vand.u32 %v53, 127
    %vm55 = vcmp.lt.s32.totalorder %v54, 1
    %v56 = vsel %vm55, %v50, %v52
    %v57 = vsel %vm55, %v52, %v50
    %v58 = vld [vmem:[#allocation5] sm:$0xf]
    %s59 = scalar_lea.vmem [#allocation5], 4
    %v60 = vld [vmem:[%s59] sm:$0xf]
    %vm61 = vcmask 31744
    %v63 = vsel %vm61, %v60, 0
    %vm65 = vcmask 1043456
    %v66 = vsel %vm65, %v45, 0
    %v68 = vsel %vm65, %v47, 0
    %70 = vmatprep.subr.mxu0 %v68
    %71 = vmatpush1.msra.mxu0 %v66
    %72 = vmatprep.subr.mxu0 0.0
    %73 = vmatpush1.msra.mxu0 0.0
    %74 = vmatprep.subr.mxu0 0.0
    %75 = vmatpush1.msra.mxu0 0.0
    %76 = vmatprep.subr.mxu0 0.0
    %77 = vmatpush1.msra.mxu0 0.0
    %78 = vmatprep.subr.mxu0 0.0
    %79 = vmatpush1.msra.mxu0 0.0
    %80 = vmatprep.subr.mxu0 0.0
    %81 = vmatpush1.msra.mxu0 0.0
    %82 = vmatprep.subr.mxu0 0.0
    %83 = vmatpush1.msra.mxu0 0.0
    %84 = vmatprep.subr.mxu0 0.0
    %85 = vmatpush1.msra.mxu0 0.0
    %86 = vmatprep.subr.mxu0 0.0
    %87 = vmatpush1.msra.mxu0 0.0
    %88 = vmatprep.subr.mxu0 0.0
    %89 = vmatpush1.msra.mxu0 0.0
    %90 = vmatprep.subr.mxu0 0.0
    %91 = vmatpush1.msra.mxu0 0.0
    %92 = vmatprep.subr.mxu0 0.0
    %93 = vmatpush1.msra.mxu0 0.0
    %94 = vmatprep.subr.mxu0 0.0
    %95 = vmatpush1.msra.mxu0 0.0
    %96 = vmatprep.subr.mxu0 0.0
    %97 = vmatpush1.msra.mxu0 0.0
    %98 = vmatprep.subr.mxu0 0.0
    %99 = vmatpush1.msra.mxu0 0.0
    %100 = vmatprep.subr.mxu0 0.0
    %101 = vmatpush1.msra.mxu0 0.0
    %102 = vmatprep.subr.mxu0 0.0
    %103 = vmatpush1.msra.mxu0 0.0
    %104 = vmatprep.subr.mxu0 0.0
    %105 = vmatpush1.msra.mxu0 0.0
    %106 = vmatprep.subr.mxu0 0.0
    %107 = vmatpush1.msra.mxu0 0.0
    %108 = vmatprep.subr.mxu0 0.0
    %109 = vmatpush1.msra.mxu0 0.0
    %110 = vmatprep.subr.mxu0 0.0
    %111 = vmatpush1.msra.mxu0 0.0
    %112 = vmatprep.subr.mxu0 0.0
    %113 = vmatpush1.msra.mxu0 0.0
    %114 = vmatprep.subr.mxu0 0.0
    %115 = vmatpush1.msra.mxu0 0.0
    %116 = vmatprep.subr.mxu0 0.0
    %117 = vmatpush1.msra.mxu0 0.0
    %118 = vmatprep.subr.mxu0 0.0
    %119 = vmatpush1.msra.mxu0 0.0
    %120 = vmatprep.subr.mxu0 0.0
    %121 = vmatpush1.msra.mxu0 0.0
    %122 = vmatprep.subr.mxu0 0.0
    %123 = vmatpush1.msra.mxu0 0.0
    %124 = vmatprep.subr.mxu0 0.0
    %125 = vmatpush1.msra.mxu0 0.0
    %126 = vmatprep.subr.mxu0 0.0
    %127 = vmatpush1.msra.mxu0 0.0
    %128 = vmatprep.subr.mxu0 0.0
    %129 = vmatpush1.msra.mxu0 0.0
    %130 = vmatprep.subr.mxu0 0.0
    %131 = vmatpush1.msra.mxu0 0.0
    %132 = vmatprep.subr.mxu0 0.0
    %133 = vmatpush1.msra.mxu0 0.0
    %134 = vmatprep.mubr.f32.mxu0 0.0
    %135 = vmatmul.mubr.f32.gmra.mrb[0].mxu0 %v63
    %v136 = vpop.f32.mrb[0].mxu0
    %v137 = vadd.f32 0.0, %v136
    %v138 = vpop.f32.mrb[0].mxu0
    %v139 = vadd.f32 0.0, %v138
    %140 = vdwg.mxu0
    %v142 = vsel %vm61, %v58, 0
    %v145 = vsel %vm65, %v57, 0
    %v148 = vsel %vm65, %v56, 0
    %150 = vmatprep.subr.mxu0 %v148
    %151 = vmatpush1.msra.mxu0 %v145
    %152 = vmatprep.subr.mxu0 0.0
    %153 = vmatpush1.msra.mxu0 0.0
    %154 = vmatprep.subr.mxu0 0.0
    %155 = vmatpush1.msra.mxu0 0.0
    %156 = vmatprep.subr.mxu0 0.0
    %157 = vmatpush1.msra.mxu0 0.0
    %158 = vmatprep.subr.mxu0 0.0
    %159 = vmatpush1.msra.mxu0 0.0
    %160 = vmatprep.subr.mxu0 0.0
    %161 = vmatpush1.msra.mxu0 0.0
    %162 = vmatprep.subr.mxu0 0.0
    %163 = vmatpush1.msra.mxu0 0.0
    %164 = vmatprep.subr.mxu0 0.0
    %165 = vmatpush1.msra.mxu0 0.0
    %166 = vmatprep.subr.mxu0 0.0
    %167 = vmatpush1.msra.mxu0 0.0
    %168 = vmatprep.subr.mxu0 0.0
    %169 = vmatpush1.msra.mxu0 0.0
    %170 = vmatprep.subr.mxu0 0.0
    %171 = vmatpush1.msra.mxu0 0.0
    %172 = vmatprep.subr.mxu0 0.0
    %173 = vmatpush1.msra.mxu0 0.0
    %174 = vmatprep.subr.mxu0 0.0
    %175 = vmatpush1.msra.mxu0 0.0
    %176 = vmatprep.subr.mxu0 0.0
    %177 = vmatpush1.msra.mxu0 0.0
    %178 = vmatprep.subr.mxu0 0.0
    %179 = vmatpush1.msra.mxu0 0.0
    %180 = vmatprep.subr.mxu0 0.0
    %181 = vmatpush1.msra.mxu0 0.0
    %182 = vmatprep.subr.mxu0 0.0
    %183 = vmatpush1.msra.mxu0 0.0
    %184 = vmatprep.subr.mxu0 0.0
    %185 = vmatpush1.msra.mxu0 0.0
    %186 = vmatprep.subr.mxu0 0.0
    %187 = vmatpush1.msra.mxu0 0.0
    %188 = vmatprep.subr.mxu0 0.0
    %189 = vmatpush1.msra.mxu0 0.0
    %190 = vmatprep.subr.mxu0 0.0
    %191 = vmatpush1.msra.mxu0 0.0
    %192 = vmatprep.subr.mxu0 0.0
    %193 = vmatpush1.msra.mxu0 0.0
    %194 = vmatprep.subr.mxu0 0.0
    %195 = vmatpush1.msra.mxu0 0.0
    %196 = vmatprep.subr.mxu0 0.0
    %197 = vmatpush1.msra.mxu0 0.0
    %198 = vmatprep.subr.mxu0 0.0
    %199 = vmatpush1.msra.mxu0 0.0
    %200 = vmatprep.subr.mxu0 0.0
    %201 = vmatpush1.msra.mxu0 0.0
    %202 = vmatprep.subr.mxu0 0.0
    %203 = vmatpush1.msra.mxu0 0.0
    %204 = vmatprep.subr.mxu0 0.0
    %205 = vmatpush1.msra.mxu0 0.0
    %206 = vmatprep.subr.mxu0 0.0
    %207 = vmatpush1.msra.mxu0 0.0
    %208 = vmatprep.subr.mxu0 0.0
    %209 = vmatpush1.msra.mxu0 0.0
    %210 = vmatprep.subr.mxu0 0.0
    %211 = vmatpush1.msra.mxu0 0.0
    %212 = vmatprep.subr.mxu0 0.0
    %213 = vmatpush1.msra.mxu0 0.0
    %214 = vmatprep.mubr.f32.mxu0 0.0
    %215 = vmatmul.mubr.f32.gmra.mrb[0].mxu0 %v142
    %v216 = vpop.f32.mrb[0].mxu0
    %v217 = vadd.f32 %v137, %v216
    %v218 = vpop.f32.mrb[0].mxu0
    %v219 = vadd.f32 %v139, %v218
    %220 = vdwg.mxu0
    %221 = vrot.lane.b32.xlu0 %v45, 127
    %v222 = vpop.permute.xlu0 %221
    %223 = vrot.lane.b32.xlu0 %v47, 127
    %v224 = vpop.permute.xlu0 %223
    %vm225 = vcmp.lt.s32.totalorder %v54, 127
    %v226 = vsel %vm225, %v222, %v224
    %v227 = vsel %vm225, %v224, %v222
    %s228 = scalar_lea.vmem [#allocation5], 8
    %v229 = vld [vmem:[%s228] sm:$0xf]
    %v231 = vsel %vm61, %v229, 0
    %v234 = vsel %vm65, %v226, 0
    %v237 = vsel %vm65, %v227, 0
    %239 = vmatprep.subr.mxu0 %v237
    %240 = vmatpush1.msra.mxu0 %v234
    %241 = vmatprep.subr.mxu0 0.0
    %242 = vmatpush1.msra.mxu0 0.0
    %243 = vmatprep.subr.mxu0 0.0
    %244 = vmatpush1.msra.mxu0 0.0
    %245 = vmatprep.subr.mxu0 0.0
    %246 = vmatpush1.msra.mxu0 0.0
    %247 = vmatprep.subr.mxu0 0.0
    %248 = vmatpush1.msra.mxu0 0.0
    %249 = vmatprep.subr.mxu0 0.0
    %250 = vmatpush1.msra.mxu0 0.0
    %251 = vmatprep.subr.mxu0 0.0
    %252 = vmatpush1.msra.mxu0 0.0
    %253 = vmatprep.subr.mxu0 0.0
    %254 = vmatpush1.msra.mxu0 0.0
    %255 = vmatprep.subr.mxu0 0.0
    %256 = vmatpush1.msra.mxu0 0.0
    %257 = vmatprep.subr.mxu0 0.0
    %258 = vmatpush1.msra.mxu0 0.0
    %259 = vmatprep.subr.mxu0 0.0
    %260 = vmatpush1.msra.mxu0 0.0
    %261 = vmatprep.subr.mxu0 0.0
    %262 = vmatpush1.msra.mxu0 0.0
    %263 = vmatprep.subr.mxu0 0.0
    %264 = vmatpush1.msra.mxu0 0.0
    %265 = vmatprep.subr.mxu0 0.0
    %266 = vmatpush1.msra.mxu0 0.0
    %267 = vmatprep.subr.mxu0 0.0
    %268 = vmatpush1.msra.mxu0 0.0
    %269 = vmatprep.subr.mxu0 0.0
    %270 = vmatpush1.msra.mxu0 0.0
    %271 = vmatprep.subr.mxu0 0.0
    %272 = vmatpush1.msra.mxu0 0.0
    %273 = vmatprep.subr.mxu0 0.0
    %274 = vmatpush1.msra.mxu0 0.0
    %275 = vmatprep.subr.mxu0 0.0
    %276 = vmatpush1.msra.mxu0 0.0
    %277 = vmatprep.subr.mxu0 0.0
    %278 = vmatpush1.msra.mxu0 0.0
    %279 = vmatprep.subr.mxu0 0.0
    %280 = vmatpush1.msra.mxu0 0.0
    %281 = vmatprep.subr.mxu0 0.0
    %282 = vmatpush1.msra.mxu0 0.0
    %283 = vmatprep.subr.mxu0 0.0
    %284 = vmatpush1.msra.mxu0 0.0
    %285 = vmatprep.subr.mxu0 0.0
    %286 = vmatpush1.msra.mxu0 0.0
    %287 = vmatprep.subr.mxu0 0.0
    %288 = vmatpush1.msra.mxu0 0.0
    %289 = vmatprep.subr.mxu0 0.0
    %290 = vmatpush1.msra.mxu0 0.0
    %291 = vmatprep.subr.mxu0 0.0
    %292 = vmatpush1.msra.mxu0 0.0
    %293 = vmatprep.subr.mxu0 0.0
    %294 = vmatpush1.msra.mxu0 0.0
    %295 = vmatprep.subr.mxu0 0.0
    %296 = vmatpush1.msra.mxu0 0.0
    %297 = vmatprep.subr.mxu0 0.0
    %298 = vmatpush1.msra.mxu0 0.0
    %299 = vmatprep.subr.mxu0 0.0
    %300 = vmatpush1.msra.mxu0 0.0
    %301 = vmatprep.subr.mxu0 0.0
    %302 = vmatpush1.msra.mxu0 0.0
    %303 = vmatprep.mubr.f32.mxu0 0.0
    %304 = vmatmul.mubr.f32.gmra.mrb[0].mxu0 %v231
    %v305 = vpop.f32.mrb[0].mxu0
    %v306 = vadd.f32 0.0, %v305
    %v307 = vpop.f32.mrb[0].mxu0
    %v308 = vadd.f32 0.0, %v307
    %309 = vdwg.mxu0
    %v310 = vadd.f32 %v217, %v306
    %v311 = vadd.f32 %v219, %v308
    %v314 = vcombine.low %v310, %v311
    %316 = vst [vmem:[#allocation7] sm:$0xff] %v314
    %v318 = vlaneseq
    %v319 = vshrl.u32 %v318, 7
    %v320 = vsub.s32 0, %v319
    %v321 = vrot.slane %v44, %v320
    %v322 = vlaneseq
    %v323 = vshrl.u32 %v322, 7
    %v324 = vsub.s32 1, %v323
    %v325 = vrot.slane %v44, %v324
    %v328 = vmul.f32 %v310, %v321
    %v329 = vmul.f32 %v311, %v325
    %v330 = vsel %vm65, %v328, 0.0
    %v331 = vsel %vm65, %v329, 0.0
    %v332 = vadd.f32 %v330, %v331
    %333 = vadd.xlane.f32.xlu0 %v332
    %v334 = vpop.xlane.xlu0 %333
    %v335 = vmul.f32 %v334, 0.03125
    %v336 = vsub.f32 %v310, %v335
    %v337 = vsub.f32 %v311, %v335
    %v338 = vmul.f32 %v336, %v321
    %v339 = vmul.f32 %v337, %v325
    %vm340 = vcmask 3072
    %341 = vst.msk [vmem:[%s4] sm:$0xf] %vm340, %v334
    %v342 = vmul.f32 %v338, %v338
    %v343 = vmul.f32 %v339, %v339
    %v344 = vsel %vm65, %v342, 0.0
    %v345 = vsel %vm65, %v343, 0.0
    %v346 = vadd.f32 %v344, %v345
    %347 = vadd.xlane.f32.xlu0 %v346
    %v348 = vpop.xlane.xlu0 %347
    %349 = vst.msk [vmem:[%s5] sm:$0xf] %vm340, %v348
    // Predicated region
    $region22: #{tpu_custom_call.1} parent=1 // pred_check
      _
    $region23: #{tpu_custom_call.1} parent=1 // pred_check_branch
      %351 = sbr.rel (0) target = $region25
    $region24: #{tpu_custom_call.1} parent=1 // pred_region
      %s353 = ssub.s32 128, 128
      %354 = vsyncadd [#allocation4], %s353
      %s356 = sshll.u32 [#allocation7], 4
      %s357 = int_to_ptr.vmem [resolvable:$true] %s356
      %359 = dma.vmem_to_hbm [thread:$0]  %s357, 128, %s3, [#allocation4]
    $region25: #{tpu_custom_call.1} parent=1 // pred_fallthru
      _
    // Predicated region
    $region26: #{tpu_custom_call.1} parent=1 // pred_check
      _
    $region27: #{tpu_custom_call.1} parent=1 // pred_check_branch
      %361 = sbr.rel (0) target = $region29
    $region28: #{tpu_custom_call.1} parent=1 // pred_region
      _
    $region29: #{tpu_custom_call.1} parent=1 // pred_fallthru
      _
    // Predicated region
    $region30: #{tpu_custom_call.1} parent=1 // pred_check
      _
    $region31: #{tpu_custom_call.1} parent=1 // pred_check_branch
      %363 = sbr.rel (0) target = $region33
    $region32: #{tpu_custom_call.1} parent=1 // pred_region
      _
    $region33: #{tpu_custom_call.1} parent=1 // pred_fallthru
      _
    // Predicated region
    $region34: #{tpu_custom_call.1} parent=1 // pred_check
      _
    $region35: #{tpu_custom_call.1} parent=1 // pred_check_branch
      %365 = sbr.rel (0) target = $region37
    $region36: #{tpu_custom_call.1} parent=1 // pred_region
      %366 = dma.done [#allocation4], 128
    $region37: #{tpu_custom_call.1} parent=1 // pred_fallthru
      _
    // Predicated region
    $region38: #{tpu_custom_call.1} parent=1 // pred_check
      _
    $region39: #{tpu_custom_call.1} parent=1 // pred_check_branch
      %368 = sbr.rel (0) target = $region41
    $region40: #{tpu_custom_call.1} parent=1 // pred_region
      _
    $region41: #{tpu_custom_call.1} parent=1 // pred_fallthru
      _
    // Predicated region
    $region42: #{tpu_custom_call.1} parent=1 // pred_check
      _
    $region43: #{tpu_custom_call.1} parent=1 // pred_check_branch
      %370 = sbr.rel (0) target = $region45
    $region44: #{tpu_custom_call.1} parent=1 // pred_region
      _
    $region45: #{tpu_custom_call.1} parent=1 // pred_fallthru
      _
    %371 = vsyncpa [#allocation3], 1
    %372 = vsyncpa [#allocation6], 1
    %373 = vsyncpa [#allocation4], 1

</llo_original>
